<compile_context>
chip_gen: v7x
topology: tpu7x:2x2x1
jax: 0.10.0
libtpu: 0.0.40
codegen_flags: <defaults>
</compile_context>

<pallas_src>
import functools

import jax
import jax.numpy as jnp
from jax import lax
from jax.experimental import pallas as pl
from jax.experimental.pallas import tpu as pltpu

EPS = 1e-12  # F.normalize default eps


# ---------------------------------------------------------------------------
# Kernels
# ---------------------------------------------------------------------------
def _kernel_f32_out(x_ref, w_ref, ic_ref, o_ref, rowsq_ref):
    """float32 output: accumulate directly into the resident output block."""
    kk = pl.program_id(2)

    @pl.when(kk == 0)
    def _():
        o_ref[...] = jnp.zeros_like(o_ref)
        rowsq_ref[...] = jnp.zeros_like(rowsq_ref)

    xt = x_ref[...]
    o_ref[...] += jnp.dot(xt, w_ref[...], preferred_element_type=jnp.float32)
    xf = xt.astype(jnp.float32)
    rowsq_ref[...] += jnp.sum(xf * xf, axis=1, keepdims=True)

    @pl.when(kk == pl.num_programs(2) - 1)
    def _():
        inv_row = jnp.minimum(lax.rsqrt(rowsq_ref[...]), 1.0 / EPS)
        o_ref[...] = o_ref[...] * inv_row * ic_ref[...]


def _kernel_acc(x_ref, w_ref, ic_ref, o_ref, acc_ref, rowsq_ref):
    """Non-f32 output: f32 VMEM accumulator + cast in the epilogue."""
    kk = pl.program_id(2)

    @pl.when(kk == 0)
    def _():
        acc_ref[...] = jnp.zeros_like(acc_ref)
        rowsq_ref[...] = jnp.zeros_like(rowsq_ref)

    xt = x_ref[...]
    acc_ref[...] += jnp.dot(xt, w_ref[...], preferred_element_type=jnp.float32)
    xf = xt.astype(jnp.float32)
    rowsq_ref[...] += jnp.sum(xf * xf, axis=1, keepdims=True)

    @pl.when(kk == pl.num_programs(2) - 1)
    def _():
        inv_row = jnp.minimum(lax.rsqrt(rowsq_ref[...]), 1.0 / EPS)
        o_ref[...] = (acc_ref[...] * inv_row * ic_ref[...]).astype(o_ref.dtype)


# ---------------------------------------------------------------------------
# Wrapper helpers
# ---------------------------------------------------------------------------
def _round_up(a: int, b: int) -> int:
    return (a + b - 1) // b * b


def _sublane_multiple(dtype) -> int:
    return {4: 8, 2: 16, 1: 32}.get(jnp.dtype(dtype).itemsize, 8)


def _pick_tile(dim_r: int, target: int, mult: int) -> int:
    """Tile that divides dim_r (a multiple of mult), is a multiple of mult,
    and is closest to `target` (capped at 2*target).  Avoids padding beyond
    the 128 / sublane rounding of the problem dims."""
    if dim_r <= target:
        return dim_r
    cap = min(dim_r, 2 * target)
    best = mult
    t = mult
    while t <= cap:
        if dim_r % t == 0 and abs(t - target) <= abs(best - target):
            best = t
        t += mult
    return best


def _largest_divisor_leq(dim_r: int, limit: int, mult: int) -> int:
    best = mult
    t = mult
    while t <= min(dim_r, limit):
        if dim_r % t == 0:
            best = t
        t += mult
    return best


def _inv_norm(sq_sum: jax.Array) -> jax.Array:
    # 1 / max(||.||, EPS)  ==  min(rsqrt(sum_sq), 1/EPS): EUP rsqrt, no divide.
    return jnp.minimum(lax.rsqrt(sq_sum), 1.0 / EPS)


def column_inv_norms(weight: jax.Array) -> jax.Array:
    """(1, out_features) inverse column norms; cache when weight is reused."""
    wf = weight.astype(jnp.float32)
    return _inv_norm(jnp.sum(wf * wf, axis=0, keepdims=True))


# ---------------------------------------------------------------------------
# Public entry point
# ---------------------------------------------------------------------------
@functools.partial(jax.jit, static_argnames=("tm", "tn", "tk", "compute_dtype"))
def normed_linear(
    x: jax.Array,
    weight: jax.Array,
    inv_col: jax.Array | None = None,
    *,
    tm: int = 512,
    tn: int = 512,
    tk: int = 512,
    compute_dtype=None,
):
    """out = normalize(x, dim=1) @ normalize(weight, dim=0).

    `inv_col` (see `column_inv_norms`) can be precomputed and reused across
    calls.  If `weight` is already padded to 128-multiples, no per-call pad
    copy is made (so caching a pre-padded weight avoids that HBM pass too).
    `compute_dtype=jnp.bfloat16` casts f32 operands for the MXU (faster,
    small numerics tradeoff).  tm/tn/tk are per-generation tunables; the
    defaults target ~512 tiles, safe on v5e / v6e / v7x.
    """
    n, k = x.shape
    k2, m = weight.shape
    assert k == k2, "in_features mismatch"
    out_dtype = jnp.promote_types(x.dtype, weight.dtype)

    cd = (jnp.dtype(compute_dtype) if compute_dtype is not None
          else jnp.dtype(out_dtype))

    # Column inverse norms over the full, unpadded K axis (f32, reusable).
    if inv_col is None:
        inv_col = column_inv_norms(weight)
    inv_col = inv_col.astype(jnp.float32).reshape(1, m)

    # Round problem dims: lanes to 128, sublanes per dtype (8/16/32).
    sub = max(_sublane_multiple(cd), _sublane_multiple(out_dtype))
    n_r = _round_up(n, sub)
    m_r = _round_up(m, 128)
    k_r = _round_up(k, 128)

    # Padding-aware tile selection (tiles divide the rounded dims exactly).
    tm = _pick_tile(n_r, tm, sub)
    tn = _pick_tile(m_r, tn, 128)
    tk = _pick_tile(k_r, tk, 128)
    # v7x megacore: keep >= 2 blocks on a parallel axis when possible.
    if n_r // tm == 1 and m_r // tn == 1:
        if m_r >= 256:
            tn = _largest_divisor_leq(m_r, m_r // 2, 128)
        elif n_r >= 2 * sub:
            tm = _largest_divisor_leq(n_r, n_r // 2, sub)

    # Cast to compute dtype first (halves any pad traffic for a bf16 path).
    x_c = x if x.dtype == cd else x.astype(cd)
    w_c = weight if weight.dtype == cd else weight.astype(cd)

    x_p = x_c if (n_r, k_r) == (n, k) else jnp.pad(
        x_c, ((0, n_r - n), (0, k_r - k)))
    w_p = w_c if (k_r, m_r) == (k, m) else jnp.pad(
        w_c, ((0, k_r - k), (0, m_r - m)))
    ic_p = inv_col if m_r == m else jnp.pad(inv_col, ((0, 0), (0, m_r - m)))

    grid = (n_r // tm, m_r // tn, k_r // tk)

    f32_out = out_dtype == jnp.float32
    kernel = _kernel_f32_out if f32_out else _kernel_acc
    scratch = [pltpu.VMEM((tm, 1), jnp.float32)]            # row sum-of-squares
    if not f32_out:
        scratch = [pltpu.VMEM((tm, tn), jnp.float32)] + scratch   # f32 acc

    # VMEM budget: double-buffered x/w/out tiles + scratch; capped at 48 MiB
    # so the config is valid on v7x (64 MiB VMEM) as well as v5e/v6e.
    bx = cd.itemsize
    bo = jnp.dtype(out_dtype).itemsize
    est = (2 * tm * tk * bx + 2 * tk * tn * bx + 2 * tm * tn * bo
           + 2 * tn * 4 + tm * 4 + (0 if f32_out else tm * tn * 4))
    vmem_limit = int(min(max(2 * est, 32 << 20), 48 << 20))

    out = pl.pallas_call(
        kernel,
        out_shape=jax.ShapeDtypeStruct((n_r, m_r), out_dtype),
        grid_spec=pltpu.PrefetchScalarGridSpec(
            num_scalar_prefetch=0,
            grid=grid,
            in_specs=[
                pl.BlockSpec((tm, tk), lambda i, j, kk: (i, kk)),
                pl.BlockSpec((tk, tn), lambda i, j, kk: (kk, j)),
                pl.BlockSpec((1, tn), lambda i, j, kk: (0, j)),
            ],
            out_specs=pl.BlockSpec((tm, tn), lambda i, j, kk: (i, j)),
            scratch_shapes=scratch,
        ),
        compiler_params=pltpu.CompilerParams(
            dimension_semantics=("parallel", "parallel", "arbitrary"),
            vmem_limit_bytes=vmem_limit,
        ),
    )(x_p, w_p, ic_p)

    if (n_r, m_r) != (n, m):
        out = out[:n, :m]
    return out


# ---------------------------------------------------------------------------
# Reference / init (mirror the PyTorch module)
# ---------------------------------------------------------------------------
def init_weight(key, in_features: int, out_features: int) -> jax.Array:
    """Replicates: Tensor(in,out).uniform_(-1,1).renorm_(2, 1, 1e-5).mul_(1e5)."""
    w = jax.random.uniform(
        key, (in_features, out_features), minval=-1.0, maxval=1.0,
        dtype=jnp.float32,
    )
    col_norm = jnp.sqrt(jnp.sum(w * w, axis=0, keepdims=True))  # (1, out)
    scale = jnp.where(col_norm > 1e-5, 1e-5 / (col_norm + 1e-7), 1.0)
    return w * scale * 1e5


def _reference(x, weight):
    xn = x / jnp.maximum(jnp.linalg.norm(x, axis=1, keepdims=True), EPS)
    wn = weight / jnp.maximum(
        jnp.linalg.norm(weight, axis=0, keepdims=True), EPS)
    return jnp.dot(xn, wn, precision=lax.Precision.HIGHEST)


if __name__ == "__main__":
    key = jax.random.PRNGKey(0)
    ka, kb, kc, kd, ke, kf = jax.random.split(key, 6)

    # --- Test 1: small module-sized shapes (single tile, f32 path) ----------
    batch, in_f, out_f = 8, 32, 128
    x1 = jax.random.normal(ka, (batch, in_f), dtype=jnp.float32)
    w1 = init_weight(kb, in_f, out_f)
    o1 = jax.block_until_ready(normed_linear(x1, w1))
    r1 = _reference(x1, w1)
    assert o1.shape == (batch, out_f)
    err1 = float(jnp.max(jnp.abs(o1 - r1)))
    assert err1 < 5e-3, err1

    # --- Test 2: unaligned M/K, multi-block grid, padding path --------------
    b2, in2, out2 = 48, 640, 384
    x2 = jax.random.normal(kc, (b2, in2), dtype=jnp.float32)
    w2 = init_weight(kd, in2, out2)
    o2 = jax.block_until_ready(normed_linear(x2, w2))
    r2 = _reference(x2, w2)
    assert o2.shape == (b2, out2)
    err2 = float(jnp.max(jnp.abs(o2 - r2)))
    assert err2 < 5e-3, err2

    # --- Test 3: bf16 operands (exercises the f32-scratch accumulator path) -
    b3, in3, out3 = 16, 256, 256
    x3 = jax.random.normal(ke, (b3, in3), dtype=jnp.float32).astype(jnp.bfloat16)
    w3 = init_weight(kf, in3, out3).astype(jnp.bfloat16)
    o3 = jax.block_until_ready(normed_linear(x3, w3))
    r3 = _reference(x3.astype(jnp.float32), w3.astype(jnp.float32))
    assert o3.shape == (b3, out3) and o3.dtype == jnp.bfloat16
    err3 = float(jnp.max(jnp.abs(o3.astype(jnp.float32) - r3)))
    assert err3 < 2e-2, err3

    print("KERNEL_OK")
</pallas_src>

<mosaic_0001>
module attributes {stable_mosaic.version = 11 : i64} {
  func.func @_kernel_f32_out(%arg0: i32, %arg1: i32, %arg2: i32, %arg3: memref<8x128xf32, #tpu.memory_space<vmem>>, %arg4: memref<128x128xf32, #tpu.memory_space<vmem>>, %arg5: memref<1x128xf32, #tpu.memory_space<vmem>>, %arg6: memref<8x128xf32, #tpu.memory_space<vmem>>, %arg7: memref<8x1xf32, #tpu.memory_space<vmem>>) attributes {dimension_semantics = [#tpu.dimension_semantics<parallel>, #tpu.dimension_semantics<parallel>, #tpu.dimension_semantics<arbitrary>], iteration_bounds = array<i64: 1, 1, 1>, scalar_prefetch = 0 : i64, scratch_operands = 1 : i64, tpu.core_type = #tpu.core_type<tc>, window_params = [{transform_indices = @transform_0, window_bounds = array<i64: 8, 128>}, {transform_indices = @transform_1, window_bounds = array<i64: 128, 128>}, {transform_indices = @transform_2, window_bounds = array<i64: 1, 128>}, {transform_indices = @transform_3, window_bounds = array<i64: 8, 128>}]} {
    %c0_i32 = arith.constant 0 : i32
    %0 = arith.cmpi eq, %arg2, %c0_i32 : i32
    %1 = arith.extui %0 : i1 to i32
    %c0_i32_0 = arith.constant 0 : i32
    %2 = arith.cmpi ne, %1, %c0_i32_0 : i32
    scf.if %2 {
      %cst_15 = arith.constant 0.000000e+00 : f32
      %18 = vector.broadcast %cst_15 : f32 to vector<8x128xf32>
      %c0_16 = arith.constant 0 : index
      %c0_17 = arith.constant 0 : index
      %19 = vector.load %arg6[%c0_16, %c0_17] : memref<8x128xf32, #tpu.memory_space<vmem>>, vector<8x128xf32>
      tpu.vector_store %arg6[%c0_16, %c0_17], %18 {strides = array<i32>} : memref<8x128xf32, #tpu.memory_space<vmem>>, vector<8x128xf32>,
      %cst_18 = arith.constant 0.000000e+00 : f32
      %20 = vector.broadcast %cst_18 : f32 to vector<8x1xf32>
      %c0_19 = arith.constant 0 : index
      %c0_20 = arith.constant 0 : index
      %21 = vector.load %arg7[%c0_19, %c0_20] : memref<8x1xf32, #tpu.memory_space<vmem>>, vector<8x1xf32>
      tpu.vector_store %arg7[%c0_19, %c0_20], %20 {strides = array<i32>} : memref<8x1xf32, #tpu.memory_space<vmem>>, vector<8x1xf32>,
    } else {
    }
    %c0 = arith.constant 0 : index
    %c0_1 = arith.constant 0 : index
    %3 = vector.load %arg3[%c0, %c0_1] : memref<8x128xf32, #tpu.memory_space<vmem>>, vector<8x128xf32>
    %c0_2 = arith.constant 0 : index
    %c0_3 = arith.constant 0 : index
    %4 = vector.load %arg6[%c0_2, %c0_3] : memref<8x128xf32, #tpu.memory_space<vmem>>, vector<8x128xf32>
    %c0_4 = arith.constant 0 : index
    %c0_5 = arith.constant 0 : index
    %5 = vector.load %arg4[%c0_4, %c0_5] : memref<128x128xf32, #tpu.memory_space<vmem>>, vector<128x128xf32>
    %cst = arith.constant dense<0.000000e+00> : vector<8x128xf32>
    %6 = tpu.matmul %3, %5, %cst {dimension_numbers = #tpu.dot_dimension_numbers<[1], [0], [0], [1], [0, 0, 1, 1], [], []>} : vector<8x128xf32>, vector<128x128xf32>, vector<8x128xf32> -> vector<8x128xf32>
    %7 = arith.addf %4, %6 : vector<8x128xf32>
    %c0_6 = arith.constant 0 : index
    %c0_7 = arith.constant 0 : index
    %8 = vector.load %arg6[%c0_6, %c0_7] : memref<8x128xf32, #tpu.memory_space<vmem>>, vector<8x128xf32>
    tpu.vector_store %arg6[%c0_6, %c0_7], %7 {strides = array<i32>} : memref<8x128xf32, #tpu.memory_space<vmem>>, vector<8x128xf32>,
    %c0_8 = arith.constant 0 : index
    %c0_9 = arith.constant 0 : index
    %9 = vector.load %arg7[%c0_8, %c0_9] : memref<8x1xf32, #tpu.memory_space<vmem>>, vector<8x1xf32>
    %10 = arith.mulf %3, %3 : vector<8x128xf32>
    %cst_10 = arith.constant dense<0.000000e+00> : vector<8xf32>
    %11 = vector.multi_reduction <add>, %10, %cst_10 [1] : vector<8x128xf32> to vector<8xf32>
    %12 = vector.shape_cast %11 : vector<8xf32> to vector<8x1xf32>
    %13 = arith.addf %9, %12 : vector<8x1xf32>
    %c0_11 = arith.constant 0 : index
    %c0_12 = arith.constant 0 : index
    %14 = vector.load %arg7[%c0_11, %c0_12] : memref<8x1xf32, #tpu.memory_space<vmem>>, vector<8x1xf32>
    tpu.vector_store %arg7[%c0_11, %c0_12], %13 {strides = array<i32>} : memref<8x1xf32, #tpu.memory_space<vmem>>, vector<8x1xf32>,
    %c0_i32_13 = arith.constant 0 : i32
    %15 = arith.cmpi eq, %arg2, %c0_i32_13 : i32
    %16 = arith.extui %15 : i1 to i32
    %c0_i32_14 = arith.constant 0 : i32
    %17 = arith.cmpi ne, %16, %c0_i32_14 : i32
    scf.if %17 {
      %c0_15 = arith.constant 0 : index
      %c0_16 = arith.constant 0 : index
      %18 = vector.load %arg7[%c0_15, %c0_16] : memref<8x1xf32, #tpu.memory_space<vmem>>, vector<8x1xf32>
      %19 = math.rsqrt %18 : vector<8x1xf32>
      %cst_17 = arith.constant 9.99999995E+11 : f32
      %20 = vector.broadcast %cst_17 : f32 to vector<8x1xf32>
      %21 = arith.minimumf %19, %20 : vector<8x1xf32>
      %c0_18 = arith.constant 0 : index
      %c0_19 = arith.constant 0 : index
      %22 = vector.load %arg6[%c0_18, %c0_19] : memref<8x128xf32, #tpu.memory_space<vmem>>, vector<8x128xf32>
      %23 = vector.broadcast %21 : vector<8x1xf32> to vector<8x128xf32>
      %24 = arith.mulf %22, %23 : vector<8x128xf32>
      %c0_20 = arith.constant 0 : index
      %c0_21 = arith.constant 0 : index
      %25 = vector.load %arg5[%c0_20, %c0_21] : memref<1x128xf32, #tpu.memory_space<vmem>>, vector<1x128xf32>
      %26 = vector.broadcast %25 : vector<1x128xf32> to vector<8x128xf32>
      %27 = arith.mulf %24, %26 : vector<8x128xf32>
      %c0_22 = arith.constant 0 : index
      %c0_23 = arith.constant 0 : index
      %28 = vector.load %arg6[%c0_22, %c0_23] : memref<8x128xf32, #tpu.memory_space<vmem>>, vector<8x128xf32>
      tpu.vector_store %arg6[%c0_22, %c0_23], %27 {strides = array<i32>} : memref<8x128xf32, #tpu.memory_space<vmem>>, vector<8x128xf32>,
    } else {
    }
    return
  }
  func.func @transform_0(%arg0: i32, %arg1: i32, %arg2: i32) -> (i32, i32) {
    %c0_i32 = arith.constant 0 : i32
    return %arg0, %arg2 : i32, i32
  }
  func.func @transform_1(%arg0: i32, %arg1: i32, %arg2: i32) -> (i32, i32) {
    %c0_i32 = arith.constant 0 : i32
    return %arg2, %arg1 : i32, i32
  }
  func.func @transform_2(%arg0: i32, %arg1: i32, %arg2: i32) -> (i32, i32) {
    %c0_i32 = arith.constant 0 : i32
    %c0_i32_0 = arith.constant 0 : i32
    return %c0_i32, %arg1 : i32, i32
  }
  func.func @transform_3(%arg0: i32, %arg1: i32, %arg2: i32) -> (i32, i32) {
    %c0_i32 = arith.constant 0 : i32
    return %arg0, %arg1 : i32, i32
  }
}

</mosaic_0001>

<llo_original>
// kernel: normed_linear.1
$region0: #{normed_linear.1}
  #allocation0 [shape = 'u32[]', space=smem, size = 0x4, offset = 0x4, fixed_abs, tag = 'smem constant byte address 0x4 - core index']
  #allocation1 [shape = 'u32[144,128]{1,0:T(1,128)}', space=vmem, size = 0x12000, scoped, tag = 'internal scratch']
  #allocation2 [shape = 'f32[8,1]{1,0:T(8,128)}', space=vmem, size = 0x1000, scoped, tag = 'scratch operand']
  %s0 = inlined_call_operand.vmem [shape: f32[8,128], index: 0, kind: input, shape index: {}]
  %s1 = inlined_call_operand.vmem [shape: f32[128,128], index: 1, kind: input, shape index: {}]
  %s2 = inlined_call_operand.vmem [shape: f32[1,128], index: 2, kind: input, shape index: {}]
  %s3 = inlined_call_operand.hbm [shape: f32[8,128], index: 3, kind: output, shape index: {}]
  %s4 = sld [smem:[#allocation0]]
  $region30: #{normed_linear.1} parent=0
    _
  %s6 = ssub.s32 1, %s4
  %s7 = scalar_select 0, %s6, %s4
  $region1: #{normed_linear.1} parent=0
    #allocation3 [shape = 'u8[4096]{0}', space=vmem, size = 0x1000, scoped, tag = 'output window, operand 0, single buffered']
    #allocation4 [shape = 's32[1]{0}', space=sflag, size = 0x4, scoped, tag = 'scoped memory for normed_linear.1']
    %8 = vsyncpa [#allocation4], 0
    // Predicated region
    $region2: #{normed_linear.1} parent=1 // pred_check
      _
    $region3: #{normed_linear.1} parent=1 // pred_check_branch
      %10 = sbr.rel (0) target = $region5
    $region4: #{normed_linear.1} parent=1 // pred_region
      _
    $region5: #{normed_linear.1} parent=1 // pred_fallthru
      _
    // Predicated region
    $region6: #{normed_linear.1} parent=1 // pred_check
      _
    $region7: #{normed_linear.1} parent=1 // pred_check_branch
      %12 = sbr.rel (0) target = $region9
    $region8: #{normed_linear.1} parent=1 // pred_region
      _
    $region9: #{normed_linear.1} parent=1 // pred_fallthru
      _
    // Predicated region
    $region10: #{normed_linear.1} parent=1 // pred_check
      _
    $region11: #{normed_linear.1} parent=1 // pred_check_branch
      %14 = sbr.rel (0) target = $region13
    $region12: #{normed_linear.1} parent=1 // pred_region
      _
    $region13: #{normed_linear.1} parent=1 // pred_fallthru
      _
    %p15 = scmp.eq.s32.totalorder 0, 0
    // Predicated region
    $region14: #{normed_linear.1} parent=1 // pred_check
      %p16 = pneg %p15
    $region15: #{normed_linear.1} parent=1 // pred_check_branch
      %18 = sbr.rel (%p16) target = $region17
    $region16: #{normed_linear.1} parent=1 // pred_region
      %19 = vst [vmem:[#allocation3] sm:$0xff] 0.0
      %vm20 = vcmask 7168
      %21 = vst.msk [vmem:[#allocation2] sm:$0xff] %vm20, 0.0
    $region17: #{normed_linear.1} parent=1 // pred_fallthru
      _
    %v22 = vld [vmem:[%s0] sm:$0xff]
    %v23 = vld [vmem:[#allocation3] sm:$0xff]
    %v24 = vld [vmem:[%s1] sm:$0xff]
    %v25 = vld [vmem:[%s1 + $0x8] sm:$0xff]
    %v26 = vld [vmem:[%s1 + $0x10] sm:$0xff]
    %v27 = vld [vmem:[%s1 + $0x18] sm:$0xff]
    %v28 = vld [vmem:[%s1 + $0x20] sm:$0xff]
    %v29 = vld [vmem:[%s1 + $0x28] sm:$0xff]
    %v30 = vld [vmem:[%s1 + $0x30] sm:$0xff]
    %v31 = vld [vmem:[%s1 + $0x38] sm:$0xff]
    %v32 = vld [vmem:[%s1 + $0x40] sm:$0xff]
    %v33 = vld [vmem:[%s1 + $0x48] sm:$0xff]
    %v34 = vld [vmem:[%s1 + $0x50] sm:$0xff]
    %v35 = vld [vmem:[%s1 + $0x58] sm:$0xff]
    %v36 = vld [vmem:[%s1 + $0x60] sm:$0xff]
    %v37 = vld [vmem:[%s1 + $0x68] sm:$0xff]
    %v38 = vld [vmem:[%s1 + $0x70] sm:$0xff]
    %v39 = vld [vmem:[%s1 + $0x78] sm:$0xff]
    %40 = vmatprep.subr.mxu0 0.0
    %41 = vmatpush1.msra.mxu0 %v24
    %42 = vmatprep.subr.mxu0 0.0
    %43 = vmatpush1.msra.mxu0 %v25
    %44 = vmatprep.subr.mxu0 0.0
    %45 = vmatpush1.msra.mxu0 %v26
    %46 = vmatprep.subr.mxu0 0.0
    %47 = vmatpush1.msra.mxu0 %v27
    %48 = vmatprep.subr.mxu0 0.0
    %49 = vmatpush1.msra.mxu0 %v28
    %50 = vmatprep.subr.mxu0 0.0
    %51 = vmatpush1.msra.mxu0 %v29
    %52 = vmatprep.subr.mxu0 0.0
    %53 = vmatpush1.msra.mxu0 %v30
    %54 = vmatprep.subr.mxu0 0.0
    %55 = vmatpush1.msra.mxu0 %v31
    %56 = vmatprep.subr.mxu0 0.0
    %57 = vmatpush1.msra.mxu0 %v32
    %58 = vmatprep.subr.mxu0 0.0
    %59 = vmatpush1.msra.mxu0 %v33
    %60 = vmatprep.subr.mxu0 0.0
    %61 = vmatpush1.msra.mxu0 %v34
    %62 = vmatprep.subr.mxu0 0.0
    %63 = vmatpush1.msra.mxu0 %v35
    %64 = vmatprep.subr.mxu0 0.0
    %65 = vmatpush1.msra.mxu0 %v36
    %66 = vmatprep.subr.mxu0 0.0
    %67 = vmatpush1.msra.mxu0 %v37
    %68 = vmatprep.subr.mxu0 0.0
    %69 = vmatpush1.msra.mxu0 %v38
    %70 = vmatprep.subr.mxu0 0.0
    %71 = vmatpush1.msra.mxu0 %v39
    %72 = vmatprep.subr.mxu0 0.0
    %73 = vmatpush1.msra.mxu0 0.0
    %74 = vmatprep.subr.mxu0 0.0
    %75 = vmatpush1.msra.mxu0 0.0
    %76 = vmatprep.subr.mxu0 0.0
    %77 = vmatpush1.msra.mxu0 0.0
    %78 = vmatprep.subr.mxu0 0.0
    %79 = vmatpush1.msra.mxu0 0.0
    %80 = vmatprep.subr.mxu0 0.0
    %81 = vmatpush1.msra.mxu0 0.0
    %82 = vmatprep.subr.mxu0 0.0
    %83 = vmatpush1.msra.mxu0 0.0
    %84 = vmatprep.subr.mxu0 0.0
    %85 = vmatpush1.msra.mxu0 0.0
    %86 = vmatprep.subr.mxu0 0.0
    %87 = vmatpush1.msra.mxu0 0.0
    %88 = vmatprep.subr.mxu0 0.0
    %89 = vmatpush1.msra.mxu0 0.0
    %90 = vmatprep.subr.mxu0 0.0
    %91 = vmatpush1.msra.mxu0 0.0
    %92 = vmatprep.subr.mxu0 0.0
    %93 = vmatpush1.msra.mxu0 0.0
    %94 = vmatprep.subr.mxu0 0.0
    %95 = vmatpush1.msra.mxu0 0.0
    %96 = vmatprep.subr.mxu0 0.0
    %97 = vmatpush1.msra.mxu0 0.0
    %98 = vmatprep.subr.mxu0 0.0
    %99 = vmatpush1.msra.mxu0 0.0
    %100 = vmatprep.subr.mxu0 0.0
    %101 = vmatpush1.msra.mxu0 0.0
    %102 = vmatprep.subr.mxu0 0.0
    %103 = vmatpush1.msra.mxu0 0.0
    %104 = vmatprep.mubr.f32.mxu0 0.0
    %105 = vmatmul.mubr.f32.gmra.mrb[0].mxu0 %v22
    %v106 = vpop.f32.mrb[0].mxu0
    %v107 = vadd.f32 0.0, %v106
    %v108 = vpop.f32.mrb[0].mxu0
    %109 = vdwg.mxu0
    %v110 = vadd.f32 %v23, %v107
    %111 = vst [vmem:[#allocation3] sm:$0xff] %v110
    %v112 = vld [vmem:[#allocation2] sm:$0xff]
    %v113 = vmul.f32 %v22, %v22
    %114 = vadd.xlane.f32.xlu0 %v113
    %v115 = vpop.xlane.xlu0 %114
    %v116 = vadd.f32 %v112, %v115
    %vm117 = vcmask 7168
    %118 = vst.msk [vmem:[#allocation2] sm:$0xff] %vm117, %v116
    // Predicated region
    $region18: #{normed_linear.1} parent=1 // pred_check
      %p119 = pneg %p15
    $region19: #{normed_linear.1} parent=1 // pred_check_branch
      %121 = sbr.rel (%p119) target = $region21
    $region20: #{normed_linear.1} parent=1 // pred_region
      %v122 = vld [vmem:[#allocation2] sm:$0xff]
      %v123 = vrsqrt.pop %v122
      %v124 = vmin.f32 %v123, 1e+12
      %v125 = vld [vmem:[#allocation3] sm:$0xff]
      %127 = vset.pattern.permute.xlu0 0
      %128 = vperm.xlu0 %127, %v124
      %v129 = vpop.permute.xlu0 %128
      %v131 = vmul.f32 %v125, %v129
      %v132 = vld [vmem:[%s2] sm:$0x1]
      %v134 = vlaneseq
      %v135 = vshrl.u32 %v134, 7
      %v136 = vsub.s32 0, %v135
      %v137 = vrot.slane %v132, %v136
      %v139 = vmul.f32 %v131, %v137
      %140 = vst [vmem:[#allocation3] sm:$0xff] %v139
    $region21: #{normed_linear.1} parent=1 // pred_fallthru
      _
    // Predicated region
    $region22: #{normed_linear.1} parent=1 // pred_check
      _
    $region23: #{normed_linear.1} parent=1 // pred_check_branch
      %142 = sbr.rel (0) target = $region25
    $region24: #{normed_linear.1} parent=1 // pred_region
      %s144 = ssub.s32 128, 128
      %145 = vsyncadd [#allocation4], %s144
      %s147 = sshll.u32 [#allocation3], 4
      %s148 = int_to_ptr.vmem [resolvable:$true] %s147
      %150 = dma.vmem_to_hbm [thread:$0]  %s148, 128, %s3, [#allocation4]
    $region25: #{normed_linear.1} parent=1 // pred_fallthru
      _
    // Predicated region
    $region26: #{normed_linear.1} parent=1 // pred_check
      _
    $region27: #{normed_linear.1} parent=1 // pred_check_branch
      %152 = sbr.rel (0) target = $region29
    $region28: #{normed_linear.1} parent=1 // pred_region
      %153 = dma.done [#allocation4], 128
    $region29: #{normed_linear.1} parent=1 // pred_fallthru
      _
    %154 = vsyncpa [#allocation4], 1

</llo_original>
